<compile_context>
chip_gen: v7x
topology: tpu7x:2x2x1
jax: 0.10.0
libtpu: 0.0.40
codegen_flags: <defaults>
</compile_context>

<pallas_src>
import jax
import jax.numpy as jnp
from jax.experimental import pallas as pl
from jax.experimental.pallas import tpu as pltpu

EPS = 1e-6


def _round_up(n, m):
    return ((n + m - 1) // m) * m


def _sublayer_connection_kernel(x_ref, params_ref, w_ref, o_ref):
    # x_ref: (TM, H) tile of rows; params_ref: (3, H) = [gamma; beta; bias];
    # w_ref: (H, H) bf16 weight.
    x = x_ref[...].astype(jnp.float32)
    h = x.shape[-1]

    params = params_ref[...]
    gamma = params[0:1, :]
    beta = params[1:2, :]
    bias = params[2:3, :]

    # --- LayerNorm, single fused reduction pass ---
    # s = sum(x), ss = sum(x*x)  ->  mean, unbiased var in one XLU sweep.
    s = jnp.sum(x, axis=-1, keepdims=True)
    ss = jnp.sum(x * x, axis=-1, keepdims=True)
    mean = s * (1.0 / h)
    var_unbiased = jnp.maximum(ss - s * mean, 0.0) * (1.0 / (h - 1))
    std = jnp.sqrt(var_unbiased)
    inv = pl.reciprocal(std + EPS, approx=True)          # EUP, not VALU divide
    normed = gamma * ((x - mean) * inv) + beta

    # --- sublayer: dense projection on the MXU (bf16 in, f32 accumulate) ---
    y = jnp.dot(normed.astype(jnp.bfloat16), w_ref[...],
                preferred_element_type=jnp.float32)
    y = y + bias

    # --- dropout (eval mode -> identity) + residual ---
    o_ref[...] = (x + y).astype(o_ref.dtype)


def sublayer_connection(x, gamma, beta, w, bias, *, tile_rows=256):
    """x: (B, S, H). Returns x + Linear(LayerNorm(x)) with identity dropout."""
    B, S, H = x.shape
    rows = B * S

    # Choose an effective row tile: multiple of 8 sublanes, no larger than the
    # (rounded-up) problem, defaulting to a large MXU-friendly tile.
    tm = min(_round_up(tile_rows, 8), _round_up(rows, 8))
    rows_p = _round_up(rows, tm)

    x2 = x.reshape(rows, H)
    if rows_p > rows:
        # Zero padding is safe: std=0 -> diff*inv = 0, and pad rows are
        # discarded after the call.
        x2 = jnp.pad(x2, ((0, rows_p - rows), (0, 0)))

    params = jnp.stack(
        [gamma.astype(jnp.float32),
         beta.astype(jnp.float32),
         bias.astype(jnp.float32)], axis=0)               # (3, H)
    w_bf16 = w.astype(jnp.bfloat16)

    itemsize = jnp.dtype(x.dtype).itemsize
    # double-buffered x tile + output tile + W + params, plus slack
    vmem_needed = (2 * (tm * H * itemsize)        # x tiles
                   + 2 * (tm * H * itemsize)      # out tiles
                   + 2 * (H * H * 2)              # bf16 W
                   + 2 * (3 * H * 4)              # params
                   + (4 << 20))
    vmem_limit = int(min(max(vmem_needed, 32 << 20), 112 << 20))

    cost = pl.CostEstimate(
        flops=2 * rows_p * H * H + 10 * rows_p * H,
        transcendentals=rows_p,
        bytes_accessed=2 * rows_p * H * itemsize + H * H * 2 + 3 * H * 4,
    )

    out = pl.pallas_call(
        _sublayer_connection_kernel,
        out_shape=jax.ShapeDtypeStruct((rows_p, H), x.dtype),
        grid_spec=pltpu.PrefetchScalarGridSpec(
            num_scalar_prefetch=0,
            grid=(rows_p // tm,),
            in_specs=[
                pl.BlockSpec((tm, H), lambda i: (i, 0)),   # x rows tile
                pl.BlockSpec((3, H), lambda i: (0, 0)),    # gamma/beta/bias
                pl.BlockSpec((H, H), lambda i: (0, 0)),    # W (bf16)
            ],
            out_specs=pl.BlockSpec((tm, H), lambda i: (i, 0)),
        ),
        compiler_params=pltpu.CompilerParams(
            dimension_semantics=("parallel",),
            vmem_limit_bytes=vmem_limit,
        ),
        cost_estimate=cost,
    )(x2, params, w_bf16)

    return out[:rows].reshape(B, S, H)


def _reference(x, gamma, beta, w, bias):
    x32 = x.astype(jnp.float32)
    mean = jnp.mean(x32, axis=-1, keepdims=True)
    diff = x32 - mean
    var = jnp.sum(diff * diff, axis=-1, keepdims=True) / (x.shape[-1] - 1)
    std = jnp.sqrt(var)
    normed = gamma * diff / (std + EPS) + beta
    y = normed @ w + bias
    return (x32 + y).astype(x.dtype)


if __name__ == "__main__":
    B, S, H = 2, 8, 128  # batch, seq, hidden (LayerNorm "size" == H)

    key = jax.random.PRNGKey(0)
    kx, kw, kb = jax.random.split(key, 3)

    x = jax.random.normal(kx, (B, S, H), dtype=jnp.float32)

    # LayerNorm params exactly as in __init__: ones / zeros.
    gamma = jnp.ones((H,), dtype=jnp.float32)
    beta = jnp.zeros((H,), dtype=jnp.float32)

    # Deterministic synthetic sublayer (dense H -> H).
    w = jax.random.normal(kw, (H, H), dtype=jnp.float32) * 0.02
    bias = jax.random.normal(kb, (H,), dtype=jnp.float32) * 0.02

    out = sublayer_connection(x, gamma, beta, w, bias)
    out = jax.block_until_ready(out)

    ref = _reference(x, gamma, beta, w, bias)
    assert out.shape == (B, S, H)
    # bf16 MXU operands (f32 accumulation) -> loosened tolerance vs f32 ref.
    assert jnp.allclose(out, ref, atol=2e-2, rtol=2e-2), float(
        jnp.max(jnp.abs(out - ref)))

    print("KERNEL_OK")
</pallas_src>

<mosaic_0001>
module attributes {stable_mosaic.version = 11 : i64} {
  func.func @_sublayer_connection_kernel(%arg0: i32, %arg1: memref<16x128xf32, #tpu.memory_space<vmem>>, %arg2: memref<3x128xf32, #tpu.memory_space<vmem>>, %arg3: memref<128x128xbf16, #tpu.memory_space<vmem>>, %arg4: memref<16x128xf32, #tpu.memory_space<vmem>>) attributes {dimension_semantics = [#tpu.dimension_semantics<parallel>], iteration_bounds = array<i64: 1>, scalar_prefetch = 0 : i64, scratch_operands = 0 : i64, tpu.core_type = #tpu.core_type<tc>, window_params = [{transform_indices = @transform_0, window_bounds = array<i64: 16, 128>}, {pipeline_mode = #tpu.pipeline_mode<synchronous>, transform_indices = @transform_1, window_bounds = array<i64: 3, 128>}, {pipeline_mode = #tpu.pipeline_mode<synchronous>, transform_indices = @transform_2, window_bounds = array<i64: 128, 128>}, {transform_indices = @transform_3, window_bounds = array<i64: 16, 128>}]} {
    %c0 = arith.constant 0 : index
    %c0_0 = arith.constant 0 : index
    %0 = vector.load %arg1[%c0, %c0_0] : memref<16x128xf32, #tpu.memory_space<vmem>>, vector<16x128xf32>
    %c0_1 = arith.constant 0 : index
    %c0_2 = arith.constant 0 : index
    %1 = vector.load %arg2[%c0_1, %c0_2] : memref<3x128xf32, #tpu.memory_space<vmem>>, vector<3x128xf32>
    %2 = vector.extract_strided_slice %1 {offsets = [0, 0], sizes = [1, 128], strides = [1, 1]} : vector<3x128xf32> to vector<1x128xf32>
    %3 = vector.extract_strided_slice %1 {offsets = [1, 0], sizes = [1, 128], strides = [1, 1]} : vector<3x128xf32> to vector<1x128xf32>
    %4 = vector.extract_strided_slice %1 {offsets = [2, 0], sizes = [1, 128], strides = [1, 1]} : vector<3x128xf32> to vector<1x128xf32>
    %cst = arith.constant dense<0.000000e+00> : vector<16xf32>
    %5 = vector.multi_reduction <add>, %0, %cst [1] : vector<16x128xf32> to vector<16xf32>
    %6 = vector.shape_cast %5 : vector<16xf32> to vector<16x1xf32>
    %7 = arith.mulf %0, %0 : vector<16x128xf32>
    %cst_3 = arith.constant dense<0.000000e+00> : vector<16xf32>
    %8 = vector.multi_reduction <add>, %7, %cst_3 [1] : vector<16x128xf32> to vector<16xf32>
    %9 = vector.shape_cast %8 : vector<16xf32> to vector<16x1xf32>
    %cst_4 = arith.constant 7.812500e-03 : f32
    %10 = vector.broadcast %cst_4 : f32 to vector<16x1xf32>
    %11 = arith.mulf %6, %10 : vector<16x1xf32>
    %12 = arith.mulf %6, %11 : vector<16x1xf32>
    %13 = arith.subf %9, %12 : vector<16x1xf32>
    %cst_5 = arith.constant 0.000000e+00 : f32
    %14 = vector.broadcast %cst_5 : f32 to vector<16x1xf32>
    %15 = arith.maximumf %13, %14 : vector<16x1xf32>
    %cst_6 = arith.constant 0.00787401571 : f32
    %16 = vector.broadcast %cst_6 : f32 to vector<16x1xf32>
    %17 = arith.mulf %15, %16 : vector<16x1xf32>
    %18 = math.sqrt %17 : vector<16x1xf32>
    %cst_7 = arith.constant 9.99999997E-7 : f32
    %19 = vector.broadcast %cst_7 : f32 to vector<16x1xf32>
    %20 = arith.addf %18, %19 : vector<16x1xf32>
    %21 = tpu.reciprocal %20 {approx = true} : vector<16x1xf32> -> vector<16x1xf32>
    %22 = vector.broadcast %11 : vector<16x1xf32> to vector<16x128xf32>
    %23 = arith.subf %0, %22 : vector<16x128xf32>
    %24 = vector.broadcast %21 : vector<16x1xf32> to vector<16x128xf32>
    %25 = arith.mulf %23, %24 : vector<16x128xf32>
    %26 = vector.broadcast %2 : vector<1x128xf32> to vector<16x128xf32>
    %27 = arith.mulf %26, %25 : vector<16x128xf32>
    %28 = vector.broadcast %3 : vector<1x128xf32> to vector<16x128xf32>
    %29 = arith.addf %27, %28 : vector<16x128xf32>
    %30 = arith.truncf %29 : vector<16x128xf32> to vector<16x128xbf16>
    %c0_8 = arith.constant 0 : index
    %c0_9 = arith.constant 0 : index
    %31 = vector.load %arg3[%c0_8, %c0_9] : memref<128x128xbf16, #tpu.memory_space<vmem>>, vector<128x128xbf16>
    %cst_10 = arith.constant dense<0.000000e+00> : vector<16x128xf32>
    %32 = tpu.matmul %30, %31, %cst_10 {dimension_numbers = #tpu.dot_dimension_numbers<[1], [0], [0], [1], [0, 0, 1, 1], [], []>} : vector<16x128xbf16>, vector<128x128xbf16>, vector<16x128xf32> -> vector<16x128xf32>
    %33 = vector.broadcast %4 : vector<1x128xf32> to vector<16x128xf32>
    %34 = arith.addf %32, %33 : vector<16x128xf32>
    %35 = arith.addf %0, %34 : vector<16x128xf32>
    %c0_11 = arith.constant 0 : index
    %c0_12 = arith.constant 0 : index
    %36 = vector.load %arg4[%c0_11, %c0_12] : memref<16x128xf32, #tpu.memory_space<vmem>>, vector<16x128xf32>
    tpu.vector_store %arg4[%c0_11, %c0_12], %35 {strides = array<i32>} : memref<16x128xf32, #tpu.memory_space<vmem>>, vector<16x128xf32>,
    return
  }
  func.func @transform_0(%arg0: i32) -> (i32, i32) {
    %c0_i32 = arith.constant 0 : i32
    %c0_i32_0 = arith.constant 0 : i32
    return %arg0, %c0_i32 : i32, i32
  }
  func.func @transform_1(%arg0: i32) -> (i32, i32) {
    %c0_i32 = arith.constant 0 : i32
    %c0_i32_0 = arith.constant 0 : i32
    %c0_i32_1 = arith.constant 0 : i32
    return %c0_i32, %c0_i32_0 : i32, i32
  }
  func.func @transform_2(%arg0: i32) -> (i32, i32) {
    %c0_i32 = arith.constant 0 : i32
    %c0_i32_0 = arith.constant 0 : i32
    %c0_i32_1 = arith.constant 0 : i32
    return %c0_i32, %c0_i32_0 : i32, i32
  }
  func.func @transform_3(%arg0: i32) -> (i32, i32) {
    %c0_i32 = arith.constant 0 : i32
    %c0_i32_0 = arith.constant 0 : i32
    return %arg0, %c0_i32 : i32, i32
  }
}

</mosaic_0001>

<llo_original>
// kernel: tpu_custom_call.1
$region0: #{tpu_custom_call.1}
  #allocation0 [shape = 'u32[]', space=smem, size = 0x4, offset = 0x4, fixed_abs, tag = 'smem constant byte address 0x4 - core index']
  #allocation1 [shape = 'u32[144,128]{1,0:T(1,128)}', space=vmem, size = 0x12000, scoped, tag = 'internal scratch']
  %s0 = inlined_call_operand.hbm [shape: f32[16,128], index: 0, kind: input, shape index: {}]
  %s1 = inlined_call_operand.hbm [shape: f32[3,128], index: 1, kind: input, shape index: {}]
  %s2 = inlined_call_operand.hbm [shape: bf16[128,128], index: 2, kind: input, shape index: {}]
  %s3 = inlined_call_operand.hbm [shape: f32[16,128], index: 3, kind: output, shape index: {}]
  %s4 = sld [smem:[#allocation0]]
  $region34: #{tpu_custom_call.1} parent=0
    _
  %s6 = ssub.s32 1, %s4
  %s7 = scalar_select 0, %s6, %s4
  $region1: #{tpu_custom_call.1} parent=0
    #allocation2 [shape = 'u8[8192]{0}', space=vmem, size = 0x2000, scoped, tag = 'input window, operand 0, single buffered']
    #allocation3 [shape = 's32[1]{0}', space=sflag, size = 0x4, scoped, tag = 'scoped memory for tpu_custom_call.1']
    #allocation4 [shape = 's32[1]{0}', space=sflag, size = 0x4, scoped, tag = 'scoped memory for tpu_custom_call.1']
    #allocation5 [shape = 'u8[2048]{0}', space=vmem, size = 0x800, scoped, tag = 'input window, operand 1, single buffered']
    #allocation6 [shape = 's32[1]{0}', space=sflag, size = 0x4, scoped, tag = 'scoped memory for tpu_custom_call.1']
    #allocation7 [shape = 'u8[32768]{0}', space=vmem, size = 0x8000, scoped, tag = 'input window, operand 2, single buffered']
    #allocation8 [shape = 'u8[8192]{0}', space=vmem, size = 0x2000, scoped, tag = 'output window, operand 0, single buffered']
    %8 = vsyncpa [#allocation3], 0
    %9 = vsyncpa [#allocation6], 0
    %10 = vsyncpa [#allocation4], 0
    // Predicated region
    $region2: #{tpu_custom_call.1} parent=1 // pred_check
      _
    $region3: #{tpu_custom_call.1} parent=1 // pred_check_branch
      %12 = sbr.rel (0) target = $region5
    $region4: #{tpu_custom_call.1} parent=1 // pred_region
      %s14 = ssub.s32 256, 256
      %15 = vsyncadd [#allocation3], %s14
      %s16 = sshll.u32 [#allocation2], 4
      %s17 = int_to_ptr.vmem [resolvable:$true] %s16
      %22 = dma.hbm_to_vmem [thread:$0]  %s0, 256, %s17, [#allocation3], 128, 128, 8
    $region5: #{tpu_custom_call.1} parent=1 // pred_fallthru
      _
    // Predicated region
    $region6: #{tpu_custom_call.1} parent=1 // pred_check
      _
    $region7: #{tpu_custom_call.1} parent=1 // pred_check_branch
      %24 = sbr.rel (0) target = $region9
    $region8: #{tpu_custom_call.1} parent=1 // pred_region
      %s26 = ssub.s32 64, 64
      %27 = vsyncadd [#allocation6], %s26
      %s29 = sshll.u32 [#allocation5], 4
      %s30 = int_to_ptr.vmem [resolvable:$true] %s29
      %32 = dma.hbm_to_vmem [thread:$0]  %s1, 64, %s30, [#allocation6]
    $region9: #{tpu_custom_call.1} parent=1 // pred_fallthru
      _
    // Predicated region
    $region10: #{tpu_custom_call.1} parent=1 // pred_check
      _
    $region11: #{tpu_custom_call.1} parent=1 // pred_check_branch
      %34 = sbr.rel (0) target = $region13
    $region12: #{tpu_custom_call.1} parent=1 // pred_region
      %s36 = ssub.s32 1024, 1024
      %37 = vsyncadd [#allocation6], %s36
      %s38 = sshll.u32 [#allocation7], 4
      %s39 = int_to_ptr.vmem [resolvable:$true] %s38
      %44 = dma.hbm_to_vmem [thread:$0]  %s2, 1024, %s39, [#allocation6], 64, 64, 4
    $region13: #{tpu_custom_call.1} parent=1 // pred_fallthru
      _
    // Predicated region
    $region14: #{tpu_custom_call.1} parent=1 // pred_check
      _
    $region15: #{tpu_custom_call.1} parent=1 // pred_check_branch
      %46 = sbr.rel (0) target = $region17
    $region16: #{tpu_custom_call.1} parent=1 // pred_region
      %47 = dma.done [#allocation3], 256
    $region17: #{tpu_custom_call.1} parent=1 // pred_fallthru
      _
    // Predicated region
    $region18: #{tpu_custom_call.1} parent=1 // pred_check
      _
    $region19: #{tpu_custom_call.1} parent=1 // pred_check_branch
      %49 = sbr.rel (0) target = $region21
    $region20: #{tpu_custom_call.1} parent=1 // pred_region
      %50 = dma.done [#allocation6], 64
    $region21: #{tpu_custom_call.1} parent=1 // pred_fallthru
      _
    // Predicated region
    $region22: #{tpu_custom_call.1} parent=1 // pred_check
      _
    $region23: #{tpu_custom_call.1} parent=1 // pred_check_branch
      %52 = sbr.rel (0) target = $region25
    $region24: #{tpu_custom_call.1} parent=1 // pred_region
      %53 = dma.done [#allocation6], 1024
    $region25: #{tpu_custom_call.1} parent=1 // pred_fallthru
      _
    %v55 = vld [vmem:[#allocation2] sm:$0xff]
    %v56 = vld [vmem:[#allocation2 + $0x8] sm:$0xff]
    %v57 = vld [vmem:[#allocation5] sm:$0x7]
    %58 = vadd.xlane.f32.xlu0 %v55
    %v59 = vpop.xlane.xlu0 %58
    %60 = vadd.xlane.f32.xlu0 %v56
    %v61 = vpop.xlane.xlu0 %60
    %v62 = vmul.f32 %v55, %v55
    %v63 = vmul.f32 %v56, %v56
    %64 = vadd.xlane.f32.xlu0 %v62
    %v65 = vpop.xlane.xlu0 %64
    %66 = vadd.xlane.f32.xlu0 %v63
    %v67 = vpop.xlane.xlu0 %66
    %v68 = vmul.f32 %v59, 0.0078125
    %v69 = vmul.f32 %v61, 0.0078125
    %v70 = vmul.f32 %v59, %v68
    %v71 = vmul.f32 %v61, %v69
    %v72 = vsub.f32 %v65, %v70
    %v73 = vsub.f32 %v67, %v71
    %v74 = vmax.f32 %v72, 0.0
    %v75 = vmax.f32 %v73, 0.0
    %v76 = vmul.f32 %v74, 0.007874016
    %v77 = vmul.f32 %v75, 0.007874016
    %v78 = vrsqrt.pop %v76
    %v79 = vmul.f32 %v76, %v78
    %vm80 = vcmp.eq.f32.partialorder %v76, inf
    %v81 = vsel %vm80, %v76, %v79
    %vm82 = vcmp.eq.f32.partialorder %v76, 0.0
    %v83 = vand.u32 %v76, 2147483648
    %v84 = vsel %vm82, %v83, %v81
    %v85 = vrsqrt.pop %v77
    %v86 = vmul.f32 %v77, %v85
    %vm87 = vcmp.eq.f32.partialorder %v77, inf
    %v88 = vsel %vm87, %v77, %v86
    %vm89 = vcmp.eq.f32.partialorder %v77, 0.0
    %v90 = vand.u32 %v77, 2147483648
    %v91 = vsel %vm89, %v90, %v88
    %v92 = vadd.f32 %v84, 1e-06
    %v93 = vadd.f32 %v91, 1e-06
    %v94 = vrcp.pop %v92
    %v95 = vrcp.pop %v93
    %v96 = vsub.f32 %v55, %v68
    %v97 = vsub.f32 %v56, %v69
    %v98 = vmul.f32 %v96, %v94
    %v99 = vmul.f32 %v97, %v95
    %v100 = vlaneseq
    %v101 = vshrl.u32 %v100, 7
    %v102 = vsub.s32 0, %v101
    %v103 = vrot.slane %v57, %v102
    %v104 = vmul.f32 %v103, %v98
    %v105 = vmul.f32 %v103, %v99
    %v106 = vlaneseq
    %v107 = vshrl.u32 %v106, 7
    %v108 = vsub.s32 1, %v107
    %v109 = vrot.slane %v57, %v108
    %v110 = vadd.f32 %v104, %v109
    %v111 = vadd.f32 %v105, %v109
    %v112 = vpack.c.bf16 %v111, %v110
    %v113 = vld [vmem:[#allocation7] sm:$0xf]
    %v114 = vld [vmem:[#allocation7 + $0x4] sm:$0xf]
    %v115 = vld [vmem:[#allocation7 + $0x8] sm:$0xf]
    %v116 = vld [vmem:[#allocation7 + $0xc] sm:$0xf]
    %v117 = vld [vmem:[#allocation7 + $0x10] sm:$0xf]
    %v118 = vld [vmem:[#allocation7 + $0x14] sm:$0xf]
    %v119 = vld [vmem:[#allocation7 + $0x18] sm:$0xf]
    %v120 = vld [vmem:[#allocation7 + $0x1c] sm:$0xf]
    %v121 = vld [vmem:[#allocation7 + $0x20] sm:$0xf]
    %v122 = vld [vmem:[#allocation7 + $0x24] sm:$0xf]
    %v123 = vld [vmem:[#allocation7 + $0x28] sm:$0xf]
    %v124 = vld [vmem:[#allocation7 + $0x2c] sm:$0xf]
    %v125 = vld [vmem:[#allocation7 + $0x30] sm:$0xf]
    %v126 = vld [vmem:[#allocation7 + $0x34] sm:$0xf]
    %v127 = vld [vmem:[#allocation7 + $0x38] sm:$0xf]
    %v128 = vld [vmem:[#allocation7 + $0x3c] sm:$0xf]
    %v129 = vlaneseq
    %v130 = vshrl.u32 %v129, 7
    %v131 = vsub.s32 2, %v130
    %v132 = vrot.slane %v57, %v131
    %v149 = vunpack.c.l.b16 %v113
    %v150 = vunpack.c.l.b16 %v114
    %v151 = vunpack.c.l.b16 %v115
    %v152 = vunpack.c.l.b16 %v116
    %v153 = vunpack.c.l.b16 %v117
    %v154 = vunpack.c.l.b16 %v118
    %v155 = vunpack.c.l.b16 %v119
    %v156 = vunpack.c.l.b16 %v120
    %v157 = vunpack.c.l.b16 %v121
    %v158 = vunpack.c.l.b16 %v122
    %v159 = vunpack.c.l.b16 %v123
    %v160 = vunpack.c.l.b16 %v124
    %v161 = vunpack.c.l.b16 %v125
    %v162 = vunpack.c.l.b16 %v126
    %v163 = vunpack.c.l.b16 %v127
    %v164 = vunpack.c.l.b16 %v128
    %v165 = vpack.c.b16 %v150, %v149
    %v166 = vpack.c.b16 %v152, %v151
    %v167 = vpack.c.b16 %v154, %v153
    %v168 = vpack.c.b16 %v156, %v155
    %v169 = vpack.c.b16 %v158, %v157
    %v170 = vpack.c.b16 %v160, %v159
    %v171 = vpack.c.b16 %v162, %v161
    %v172 = vpack.c.b16 %v164, %v163
    %181 = vmatprep.subr.bf16.mxu0 0
    %182 = vmatpush1.bf16.msra.mxu0 %v165
    %183 = vmatprep.subr.bf16.mxu0 0
    %184 = vmatpush1.bf16.msra.mxu0 %v166
    %185 = vmatprep.subr.bf16.mxu0 0
    %186 = vmatpush1.bf16.msra.mxu0 %v167
    %187 = vmatprep.subr.bf16.mxu0 0
    %188 = vmatpush1.bf16.msra.mxu0 %v168
    %189 = vmatprep.subr.bf16.mxu0 0
    %190 = vmatpush1.bf16.msra.mxu0 %v169
    %191 = vmatprep.subr.bf16.mxu0 0
    %192 = vmatpush1.bf16.msra.mxu0 %v170
    %193 = vmatprep.subr.bf16.mxu0 0
    %194 = vmatpush1.bf16.msra.mxu0 %v171
    %195 = vmatprep.subr.bf16.mxu0 0
    %196 = vmatpush1.bf16.msra.mxu0 %v172
    %197 = vmatprep.subr.bf16.mxu0 0
    %198 = vmatpush1.bf16.msra.mxu0 0
    %199 = vmatprep.subr.bf16.mxu0 0
    %200 = vmatpush1.bf16.msra.mxu0 0
    %201 = vmatprep.subr.bf16.mxu0 0
    %202 = vmatpush1.bf16.msra.mxu0 0
    %203 = vmatprep.subr.bf16.mxu0 0
    %204 = vmatpush1.bf16.msra.mxu0 0
    %205 = vmatprep.subr.bf16.mxu0 0
    %206 = vmatpush1.bf16.msra.mxu0 0
    %207 = vmatprep.subr.bf16.mxu0 0
    %208 = vmatpush1.bf16.msra.mxu0 0
    %209 = vmatprep.subr.bf16.mxu0 0
    %210 = vmatpush1.bf16.msra.mxu0 0
    %211 = vmatprep.subr.bf16.mxu0 0
    %212 = vmatpush1.bf16.msra.mxu0 0
    %213 = vmatprep.mubr.bf16.mxu0 0
    %214 = vmatmul.mubr.bf16.gmra.mrb[0].mxu0 %v112
    %v215 = vpop.f32.mrb[0].mxu0
    %v216 = vadd.f32 %v132, %v215
    %v217 = vpop.f32.mrb[0].mxu0
    %v218 = vpop.f32.mrb[0].mxu0
    %v219 = vadd.f32 %v132, %v218
    %v220 = vpop.f32.mrb[0].mxu0
    %221 = vdwg.mxu0
    %v222 = vadd.f32 %v55, %v216
    %v223 = vadd.f32 %v56, %v219
    %224 = vst [vmem:[#allocation8] sm:$0xff] %v222
    %225 = vst [vmem:[#allocation8 + $0x8] sm:$0xff] %v223
    // Predicated region
    $region26: #{tpu_custom_call.1} parent=1 // pred_check
      _
    $region27: #{tpu_custom_call.1} parent=1 // pred_check_branch
      %227 = sbr.rel (0) target = $region29
    $region28: #{tpu_custom_call.1} parent=1 // pred_region
      %s229 = ssub.s32 256, 256
      %230 = vsyncadd [#allocation4], %s229
      %s231 = sshll.u32 [#allocation8], 4
      %s232 = int_to_ptr.vmem [resolvable:$true] %s231
      %237 = dma.vmem_to_hbm [thread:$0]  %s232, 256, %s3, [#allocation4], 128, 128, 8
    $region29: #{tpu_custom_call.1} parent=1 // pred_fallthru
      _
    // Predicated region
    $region30: #{tpu_custom_call.1} parent=1 // pred_check
      _
    $region31: #{tpu_custom_call.1} parent=1 // pred_check_branch
      %239 = sbr.rel (0) target = $region33
    $region32: #{tpu_custom_call.1} parent=1 // pred_region
      %240 = dma.done [#allocation4], 256
    $region33: #{tpu_custom_call.1} parent=1 // pred_fallthru
      _
    %241 = vsyncpa [#allocation3], 1
    %242 = vsyncpa [#allocation6], 1
    %243 = vsyncpa [#allocation4], 1

</llo_original>
